<compile_context>
chip_gen: v7x
topology: tpu7x:2x2x1
jax: 0.10.0
libtpu: 0.0.40
codegen_flags: <defaults>
</compile_context>

<pallas_src>
import jax
import jax.numpy as jnp
from jax.experimental import pallas as pl
from jax.experimental.pallas import tpu as pltpu

_LANE = 128


def _qmat_kernel(x_ref, w1_ref, b1_ref, w2_ref, b2_ref, w3_ref, b3_ref, o_ref):
    # x tile: (4, TB) f32 -> bf16 operand for the MXU, f32 accumulation.
    x = x_ref[...].astype(jnp.bfloat16)
    # Layer 1: (32, 4) @ (4, TB) + (32, 1), ReLU   (K=4; cheap on the MXU)
    h1 = jnp.dot(w1_ref[...], x, preferred_element_type=jnp.float32) + b1_ref[...]
    h1 = jnp.maximum(h1, 0.0).astype(jnp.bfloat16)
    # Layer 2: (32, 32) @ (32, TB) + (32, 1), ReLU
    h2 = jnp.dot(w2_ref[...], h1, preferred_element_type=jnp.float32) + b2_ref[...]
    h2 = jnp.maximum(h2, 0.0).astype(jnp.bfloat16)
    # Layer 3: (mat_size, 32) @ (32, TB) + (mat_size, 1)
    out = jnp.dot(w3_ref[...], h2, preferred_element_type=jnp.float32) + b3_ref[...]
    o_ref[...] = out.astype(o_ref.dtype)


def _round_up(v, m):
    return ((v + m - 1) // m) * m


def _vmem_budget_bytes():
    """Generation-aware VMEM cap: physical capacity minus ~16 MiB headroom,
    never more than 96 MiB (v5e/v6e: 128 MiB phys -> 96; v7x: 64 MiB -> 48)."""
    try:
        cap = int(pltpu.get_tpu_info().vmem_capacity_bytes)
    except Exception:  # fall back to the smallest per-TC VMEM (v7x)
        cap = 64 * 1024 * 1024
    return min(96 * 1024 * 1024, max(16 * 1024 * 1024, cap - 16 * 1024 * 1024))


def q_mat_forward(x, params, *, block_cols=None):
    """x: (B, 4) float32. params: PyTorch-layout weights (out, in), biases (out, 1).

    Returns (B, mat_size) float32, same semantics as the nn.Sequential forward
    (bf16 MXU operands, f32 accumulation)."""
    B, in_dim = x.shape
    assert in_dim == 4
    w1, b1 = params["w1"], params["b1"]   # (32, 4),        (32, 1)
    w2, b2 = params["w2"], params["b2"]   # (32, 32),       (32, 1)
    w3, b3 = params["w3"], params["b3"]   # (mat_size, 32), (mat_size, 1)
    mat_size = w3.shape[0]

    budget = _vmem_budget_bytes()

    # Per-column working set (double-buffered x/out tiles + h1/h2 temporaries),
    # kept under roughly half the VMEM budget.
    per_col_bytes = 2 * (in_dim + 2 * 32 + mat_size) * 4
    if block_cols is None:
        block_cols = (budget // 2) // per_col_bytes
        block_cols = min(block_cols, 16384)
        block_cols = max(block_cols, 4 * _LANE)
    block_cols = max(_LANE, (block_cols // _LANE) * _LANE)

    # Batch lives on the lane axis -> pad to a multiple of 128 and choose the
    # number of grid steps: >= 2 (and even) whenever there is enough work, so
    # both v7x TensorCores get grid steps to shard.
    b_lane = _round_up(B, _LANE)
    n_steps = -(-b_lane // block_cols)
    if n_steps == 1:
        if b_lane >= 2 * _LANE:
            n_steps = 2
    elif n_steps % 2 == 1:
        n_steps += 1
    block_cols = _round_up(-(-b_lane // n_steps), _LANE)
    Bp = n_steps * block_cols

    # Transposed, batch-on-lanes input: (4, Bp).
    x_t = jnp.pad(x, ((0, Bp - B), (0, 0))).T

    # bf16 MXU operands (cast once, outside the grid loop); biases stay f32.
    w1b = w1.astype(jnp.bfloat16)
    w2b = w2.astype(jnp.bfloat16)
    w3b = w3.astype(jnp.bfloat16)

    full = lambda arr: pl.BlockSpec(arr.shape, lambda i: (0, 0))

    weight_bytes = sum(int(a.size) * a.dtype.itemsize
                       for a in (w1b, b1, w2b, b2, w3b, b3))
    cost = pl.CostEstimate(
        flops=2 * Bp * (in_dim * 32 + 32 * 32 + 32 * mat_size),
        transcendentals=0,
        bytes_accessed=4 * Bp * (in_dim + mat_size) + weight_bytes,
    )

    out_t = pl.pallas_call(
        _qmat_kernel,
        out_shape=jax.ShapeDtypeStruct((mat_size, Bp), jnp.float32),
        grid_spec=pl.GridSpec(
            grid=(n_steps,),
            in_specs=[
                pl.BlockSpec((in_dim, block_cols), lambda i: (0, i)),   # x tile
                full(w1b), full(b1),
                full(w2b), full(b2),
                full(w3b), full(b3),
            ],
            out_specs=pl.BlockSpec((mat_size, block_cols), lambda i: (0, i)),
        ),
        compiler_params=pltpu.CompilerParams(
            dimension_semantics=("parallel",),
            vmem_limit_bytes=budget,
        ),
        cost_estimate=cost,
    )(x_t, w1b, b1, w2b, b2, w3b, b3)

    # Slice padded columns off BEFORE the transpose back to (B, mat_size).
    return out_t[:, :B].T


def init_params(key, mat_size):
    """Deterministic init mimicking nn.Linear defaults (uniform +/- 1/sqrt(fan_in)).
    Weights stored PyTorch-style: (out_features, in_features); biases (out, 1)."""
    dims = [(4, 32), (32, 32), (32, mat_size)]
    params = {}
    for idx, (fan_in, fan_out) in enumerate(dims, start=1):
        key, kw, kb = jax.random.split(key, 3)
        bound = 1.0 / jnp.sqrt(float(fan_in))
        params[f"w{idx}"] = jax.random.uniform(
            kw, (fan_out, fan_in), jnp.float32, minval=-bound, maxval=bound)
        params[f"b{idx}"] = jax.random.uniform(
            kb, (fan_out, 1), jnp.float32, minval=-bound, maxval=bound)
    return params


def q_mat_reference(x, params):
    h1 = jnp.maximum(x @ params["w1"].T + params["b1"].T, 0.0)
    h2 = jnp.maximum(h1 @ params["w2"].T + params["b2"].T, 0.0)
    return h2 @ params["w3"].T + params["b3"].T


if __name__ == "__main__":
    key = jax.random.PRNGKey(0)
    k_param, k_x1, k_x2 = jax.random.split(key, 3)

    mat_size = 16
    params = init_params(k_param, mat_size)

    fwd = jax.jit(q_mat_forward)

    # Small batch (single 128-column grid step).
    x_small = jax.random.normal(k_x1, (8, 4), jnp.float32)
    out_small = jax.block_until_ready(fwd(x_small, params))
    ref_small = q_mat_reference(x_small, params)
    assert out_small.shape == (8, mat_size)
    # bf16 MXU operands (f32 accumulation) -> loosened tolerance vs f32 reference.
    assert jnp.allclose(out_small, ref_small, atol=3e-2, rtol=3e-2)

    # Larger batch exercising >=2 lane-dense tiles (grid > 1) + padding slice-off.
    x_big = jax.random.normal(k_x2, (1300, 4), jnp.float32)
    out_big = jax.block_until_ready(fwd(x_big, params))
    ref_big = q_mat_reference(x_big, params)
    assert out_big.shape == (1300, mat_size)
    assert jnp.allclose(out_big, ref_big, atol=3e-2, rtol=3e-2)

    print("KERNEL_OK")
</pallas_src>

<mosaic_0001>
module attributes {stable_mosaic.version = 11 : i64} {
  func.func @_qmat_kernel(%arg0: i32, %arg1: memref<4x128xf32, #tpu.memory_space<vmem>>, %arg2: memref<32x4xbf16, #tpu.memory_space<vmem>>, %arg3: memref<32x1xf32, #tpu.memory_space<vmem>>, %arg4: memref<32x32xbf16, #tpu.memory_space<vmem>>, %arg5: memref<32x1xf32, #tpu.memory_space<vmem>>, %arg6: memref<16x32xbf16, #tpu.memory_space<vmem>>, %arg7: memref<16x1xf32, #tpu.memory_space<vmem>>, %arg8: memref<16x128xf32, #tpu.memory_space<vmem>>) attributes {dimension_semantics = [#tpu.dimension_semantics<parallel>], iteration_bounds = array<i64: 1>, scalar_prefetch = 0 : i64, scratch_operands = 0 : i64, tpu.core_type = #tpu.core_type<tc>, window_params = [{transform_indices = @transform_0, window_bounds = array<i64: 4, 128>}, {pipeline_mode = #tpu.pipeline_mode<synchronous>, transform_indices = @transform_1, window_bounds = array<i64: 32, 4>}, {pipeline_mode = #tpu.pipeline_mode<synchronous>, transform_indices = @transform_2, window_bounds = array<i64: 32, 1>}, {pipeline_mode = #tpu.pipeline_mode<synchronous>, transform_indices = @transform_3, window_bounds = array<i64: 32, 32>}, {pipeline_mode = #tpu.pipeline_mode<synchronous>, transform_indices = @transform_4, window_bounds = array<i64: 32, 1>}, {pipeline_mode = #tpu.pipeline_mode<synchronous>, transform_indices = @transform_5, window_bounds = array<i64: 16, 32>}, {pipeline_mode = #tpu.pipeline_mode<synchronous>, transform_indices = @transform_6, window_bounds = array<i64: 16, 1>}, {transform_indices = @transform_7, window_bounds = array<i64: 16, 128>}]} {
    %c0 = arith.constant 0 : index
    %c0_0 = arith.constant 0 : index
    %0 = vector.load %arg1[%c0, %c0_0] : memref<4x128xf32, #tpu.memory_space<vmem>>, vector<4x128xf32>
    %1 = arith.truncf %0 : vector<4x128xf32> to vector<4x128xbf16>
    %c0_1 = arith.constant 0 : index
    %c0_2 = arith.constant 0 : index
    %2 = vector.load %arg2[%c0_1, %c0_2] : memref<32x4xbf16, #tpu.memory_space<vmem>>, vector<32x4xbf16>
    %cst = arith.constant dense<0.000000e+00> : vector<32x128xf32>
    %3 = tpu.matmul %2, %1, %cst {dimension_numbers = #tpu.dot_dimension_numbers<[1], [0], [0], [1], [0, 0, 1, 1], [], []>} : vector<32x4xbf16>, vector<4x128xbf16>, vector<32x128xf32> -> vector<32x128xf32>
    %c0_3 = arith.constant 0 : index
    %c0_4 = arith.constant 0 : index
    %4 = vector.load %arg3[%c0_3, %c0_4] : memref<32x1xf32, #tpu.memory_space<vmem>>, vector<32x1xf32>
    %5 = vector.broadcast %4 : vector<32x1xf32> to vector<32x128xf32>
    %6 = arith.addf %3, %5 : vector<32x128xf32>
    %cst_5 = arith.constant 0.000000e+00 : f32
    %7 = vector.broadcast %cst_5 : f32 to vector<32x128xf32>
    %8 = arith.maximumf %6, %7 : vector<32x128xf32>
    %9 = arith.truncf %8 : vector<32x128xf32> to vector<32x128xbf16>
    %c0_6 = arith.constant 0 : index
    %c0_7 = arith.constant 0 : index
    %10 = vector.load %arg4[%c0_6, %c0_7] : memref<32x32xbf16, #tpu.memory_space<vmem>>, vector<32x32xbf16>
    %cst_8 = arith.constant dense<0.000000e+00> : vector<32x128xf32>
    %11 = tpu.matmul %10, %9, %cst_8 {dimension_numbers = #tpu.dot_dimension_numbers<[1], [0], [0], [1], [0, 0, 1, 1], [], []>} : vector<32x32xbf16>, vector<32x128xbf16>, vector<32x128xf32> -> vector<32x128xf32>
    %c0_9 = arith.constant 0 : index
    %c0_10 = arith.constant 0 : index
    %12 = vector.load %arg5[%c0_9, %c0_10] : memref<32x1xf32, #tpu.memory_space<vmem>>, vector<32x1xf32>
    %13 = vector.broadcast %12 : vector<32x1xf32> to vector<32x128xf32>
    %14 = arith.addf %11, %13 : vector<32x128xf32>
    %cst_11 = arith.constant 0.000000e+00 : f32
    %15 = vector.broadcast %cst_11 : f32 to vector<32x128xf32>
    %16 = arith.maximumf %14, %15 : vector<32x128xf32>
    %17 = arith.truncf %16 : vector<32x128xf32> to vector<32x128xbf16>
    %c0_12 = arith.constant 0 : index
    %c0_13 = arith.constant 0 : index
    %18 = vector.load %arg6[%c0_12, %c0_13] : memref<16x32xbf16, #tpu.memory_space<vmem>>, vector<16x32xbf16>
    %cst_14 = arith.constant dense<0.000000e+00> : vector<16x128xf32>
    %19 = tpu.matmul %18, %17, %cst_14 {dimension_numbers = #tpu.dot_dimension_numbers<[1], [0], [0], [1], [0, 0, 1, 1], [], []>} : vector<16x32xbf16>, vector<32x128xbf16>, vector<16x128xf32> -> vector<16x128xf32>
    %c0_15 = arith.constant 0 : index
    %c0_16 = arith.constant 0 : index
    %20 = vector.load %arg7[%c0_15, %c0_16] : memref<16x1xf32, #tpu.memory_space<vmem>>, vector<16x1xf32>
    %21 = vector.broadcast %20 : vector<16x1xf32> to vector<16x128xf32>
    %22 = arith.addf %19, %21 : vector<16x128xf32>
    %c0_17 = arith.constant 0 : index
    %c0_18 = arith.constant 0 : index
    %23 = vector.load %arg8[%c0_17, %c0_18] : memref<16x128xf32, #tpu.memory_space<vmem>>, vector<16x128xf32>
    tpu.vector_store %arg8[%c0_17, %c0_18], %22 {strides = array<i32>} : memref<16x128xf32, #tpu.memory_space<vmem>>, vector<16x128xf32>,
    return
  }
  func.func @transform_0(%arg0: i32) -> (i32, i32) {
    %c0_i32 = arith.constant 0 : i32
    %c0_i32_0 = arith.constant 0 : i32
    return %c0_i32, %arg0 : i32, i32
  }
  func.func @transform_1(%arg0: i32) -> (i32, i32) {
    %c0_i32 = arith.constant 0 : i32
    %c0_i32_0 = arith.constant 0 : i32
    %c0_i32_1 = arith.constant 0 : i32
    return %c0_i32, %c0_i32_0 : i32, i32
  }
  func.func @transform_2(%arg0: i32) -> (i32, i32) {
    %c0_i32 = arith.constant 0 : i32
    %c0_i32_0 = arith.constant 0 : i32
    %c0_i32_1 = arith.constant 0 : i32
    return %c0_i32, %c0_i32_0 : i32, i32
  }
  func.func @transform_3(%arg0: i32) -> (i32, i32) {
    %c0_i32 = arith.constant 0 : i32
    %c0_i32_0 = arith.constant 0 : i32
    %c0_i32_1 = arith.constant 0 : i32
    return %c0_i32, %c0_i32_0 : i32, i32
  }
  func.func @transform_4(%arg0: i32) -> (i32, i32) {
    %c0_i32 = arith.constant 0 : i32
    %c0_i32_0 = arith.constant 0 : i32
    %c0_i32_1 = arith.constant 0 : i32
    return %c0_i32, %c0_i32_0 : i32, i32
  }
  func.func @transform_5(%arg0: i32) -> (i32, i32) {
    %c0_i32 = arith.constant 0 : i32
    %c0_i32_0 = arith.constant 0 : i32
    %c0_i32_1 = arith.constant 0 : i32
    return %c0_i32, %c0_i32_0 : i32, i32
  }
  func.func @transform_6(%arg0: i32) -> (i32, i32) {
    %c0_i32 = arith.constant 0 : i32
    %c0_i32_0 = arith.constant 0 : i32
    %c0_i32_1 = arith.constant 0 : i32
    return %c0_i32, %c0_i32_0 : i32, i32
  }
  func.func @transform_7(%arg0: i32) -> (i32, i32) {
    %c0_i32 = arith.constant 0 : i32
    %c0_i32_0 = arith.constant 0 : i32
    return %c0_i32, %arg0 : i32, i32
  }
}

</mosaic_0001>

<llo_original>
// kernel: q_mat_forward.1
$region0: #{q_mat_forward.1}
  #allocation0 [shape = 'u32[]', space=smem, size = 0x4, offset = 0x4, fixed_abs, tag = 'smem constant byte address 0x4 - core index']
  #allocation1 [shape = 'u32[144,128]{1,0:T(1,128)}', space=vmem, size = 0x12000, scoped, tag = 'internal scratch']
  %s0 = inlined_call_operand.vmem [shape: f32[4,128], index: 0, kind: input, shape index: {}]
  %s1 = inlined_call_operand.vmem [shape: bf16[32,4], index: 1, kind: input, shape index: {}]
  %s2 = inlined_call_operand.vmem [shape: f32[32,1], index: 2, kind: input, shape index: {}]
  %s3 = inlined_call_operand.vmem [shape: bf16[32,32], index: 3, kind: input, shape index: {}]
  %s4 = inlined_call_operand.vmem [shape: f32[32,1], index: 4, kind: input, shape index: {}]
  %s5 = inlined_call_operand.vmem [shape: bf16[16,32], index: 5, kind: input, shape index: {}]
  %s6 = inlined_call_operand.vmem [shape: f32[16,1], index: 6, kind: input, shape index: {}]
  %s7 = inlined_call_operand.vmem [shape: f32[16,128], index: 7, kind: output, shape index: {}]
  %s8 = sld [smem:[#allocation0]]
  $region38: #{q_mat_forward.1} parent=0
    _
  %s10 = ssub.s32 1, %s8
  %s11 = scalar_select 0, %s10, %s8
  // Predicated region
  $region2: #{q_mat_forward.1} parent=0 // pred_check
    _
  $region3: #{q_mat_forward.1} parent=0 // pred_check_branch
    %13 = sbr.rel (0) target = $region5
  $region4: #{q_mat_forward.1} parent=0 // pred_region
    _
  $region5: #{q_mat_forward.1} parent=0 // pred_fallthru
    _
  // Predicated region
  $region6: #{q_mat_forward.1} parent=0 // pred_check
    _
  $region7: #{q_mat_forward.1} parent=0 // pred_check_branch
    %15 = sbr.rel (0) target = $region9
  $region8: #{q_mat_forward.1} parent=0 // pred_region
    _
  $region9: #{q_mat_forward.1} parent=0 // pred_fallthru
    _
  // Predicated region
  $region10: #{q_mat_forward.1} parent=0 // pred_check
    _
  $region11: #{q_mat_forward.1} parent=0 // pred_check_branch
    %17 = sbr.rel (0) target = $region13
  $region12: #{q_mat_forward.1} parent=0 // pred_region
    _
  $region13: #{q_mat_forward.1} parent=0 // pred_fallthru
    _
  // Predicated region
  $region14: #{q_mat_forward.1} parent=0 // pred_check
    _
  $region15: #{q_mat_forward.1} parent=0 // pred_check_branch
    %19 = sbr.rel (0) target = $region17
  $region16: #{q_mat_forward.1} parent=0 // pred_region
    _
  $region17: #{q_mat_forward.1} parent=0 // pred_fallthru
    _
  // Predicated region
  $region18: #{q_mat_forward.1} parent=0 // pred_check
    _
  $region19: #{q_mat_forward.1} parent=0 // pred_check_branch
    %21 = sbr.rel (0) target = $region21
  $region20: #{q_mat_forward.1} parent=0 // pred_region
    _
  $region21: #{q_mat_forward.1} parent=0 // pred_fallthru
    _
  // Predicated region
  $region22: #{q_mat_forward.1} parent=0 // pred_check
    _
  $region23: #{q_mat_forward.1} parent=0 // pred_check_branch
    %23 = sbr.rel (0) target = $region25
  $region24: #{q_mat_forward.1} parent=0 // pred_region
    _
  $region25: #{q_mat_forward.1} parent=0 // pred_fallthru
    _
  // Predicated region
  $region26: #{q_mat_forward.1} parent=0 // pred_check
    _
  $region27: #{q_mat_forward.1} parent=0 // pred_check_branch
    %25 = sbr.rel (0) target = $region29
  $region28: #{q_mat_forward.1} parent=0 // pred_region
    _
  $region29: #{q_mat_forward.1} parent=0 // pred_fallthru
    _
  %v27 = vld [vmem:[%s0] sm:$0xf]
  %v28 = vpack.c.bf16 %v27, %v27
  %v29 = vld [vmem:[%s1] sm:$0xf]
  %v30 = vld [vmem:[%s1 + $0x4] sm:$0xf]
  %v31 = vld [vmem:[%s1 + $0x8] sm:$0xf]
  %v32 = vld [vmem:[%s1 + $0xc] sm:$0xf]
  %v33 = vld [vmem:[%s2] sm:$0xff]
  %v34 = vld [vmem:[%s2 + $0x8] sm:$0xff]
  %v35 = vld [vmem:[%s2 + $0x10] sm:$0xff]
  %v36 = vld [vmem:[%s2 + $0x18] sm:$0xff]
  %38 = vset.pattern.permute.xlu0 0
  %39 = vperm.xlu0 %38, %v33
  %v40 = vpop.permute.xlu0 %39
  %43 = vset.pattern.permute.xlu0 0
  %44 = vperm.xlu0 %43, %v34
  %v45 = vpop.permute.xlu0 %44
  %48 = vset.pattern.permute.xlu0 0
  %49 = vperm.xlu0 %48, %v35
  %v50 = vpop.permute.xlu0 %49
  %53 = vset.pattern.permute.xlu0 0
  %54 = vperm.xlu0 %53, %v36
  %v55 = vpop.permute.xlu0 %54
  %v61 = vunpack.c.l.b16 %v29
  %v62 = vunpack.c.l.b16 %v30
  %v63 = vunpack.c.l.b16 %v31
  %v64 = vunpack.c.l.b16 %v32
  %v65 = vpack.c.b16 %v62, %v61
  %v66 = vpack.c.b16 %v64, %v63
  %vm67 = vcmask 31744
  %v69 = vsel %vm67, %v65, 0
  %v72 = vsel %vm67, %v66, 0
  %vm74 = vcmask 1041408
  %v76 = vsel %vm74, %v28, 0
  %78 = vmatprep.subr.bf16.mxu0 0
  %79 = vmatpush1.bf16.msra.mxu0 %v76
  %80 = vmatprep.subr.bf16.mxu0 0
  %81 = vmatpush1.bf16.msra.mxu0 0
  %82 = vmatprep.subr.bf16.mxu0 0
  %83 = vmatpush1.bf16.msra.mxu0 0
  %84 = vmatprep.subr.bf16.mxu0 0
  %85 = vmatpush1.bf16.msra.mxu0 0
  %86 = vmatprep.subr.bf16.mxu0 0
  %87 = vmatpush1.bf16.msra.mxu0 0
  %88 = vmatprep.subr.bf16.mxu0 0
  %89 = vmatpush1.bf16.msra.mxu0 0
  %90 = vmatprep.subr.bf16.mxu0 0
  %91 = vmatpush1.bf16.msra.mxu0 0
  %92 = vmatprep.subr.bf16.mxu0 0
  %93 = vmatpush1.bf16.msra.mxu0 0
  %94 = vmatprep.subr.bf16.mxu0 0
  %95 = vmatpush1.bf16.msra.mxu0 0
  %96 = vmatprep.subr.bf16.mxu0 0
  %97 = vmatpush1.bf16.msra.mxu0 0
  %98 = vmatprep.subr.bf16.mxu0 0
  %99 = vmatpush1.bf16.msra.mxu0 0
  %100 = vmatprep.subr.bf16.mxu0 0
  %101 = vmatpush1.bf16.msra.mxu0 0
  %102 = vmatprep.subr.bf16.mxu0 0
  %103 = vmatpush1.bf16.msra.mxu0 0
  %104 = vmatprep.subr.bf16.mxu0 0
  %105 = vmatpush1.bf16.msra.mxu0 0
  %106 = vmatprep.subr.bf16.mxu0 0
  %107 = vmatpush1.bf16.msra.mxu0 0
  %108 = vmatprep.subr.bf16.mxu0 0
  %109 = vmatpush1.bf16.msra.mxu0 0
  %110 = vmatprep.mubr.bf16.mxu0 0
  %111 = vmatmul.mubr.bf16.gmra.mrb[0].mxu0 %v69
  %v112 = vpop.f32.mrb[0].mxu0
  %v113 = vadd.f32 %v40, %v112
  %v114 = vpop.f32.mrb[0].mxu0
  %v115 = vpop.f32.mrb[0].mxu0
  %v116 = vadd.f32 %v45, %v115
  %v117 = vpop.f32.mrb[0].mxu0
  %118 = vmatprep.mubr.bf16.mxu0 0
  %119 = vmatmul.mubr.bf16.gmra.mrb[0].mxu0 %v72
  %v120 = vpop.f32.mrb[0].mxu0
  %v121 = vadd.f32 %v50, %v120
  %v122 = vpop.f32.mrb[0].mxu0
  %v123 = vpop.f32.mrb[0].mxu0
  %v124 = vadd.f32 %v55, %v123
  %v125 = vpop.f32.mrb[0].mxu0
  %126 = vdwg.mxu0
  %v127 = vmax.f32 %v113, 0.0
  %v128 = vmax.f32 %v116, 0.0
  %v129 = vmax.f32 %v121, 0.0
  %v130 = vmax.f32 %v124, 0.0
  %v131 = vpack.c.bf16 %v128, %v127
  %v132 = vpack.c.bf16 %v130, %v129
  %v133 = vld [vmem:[%s3] sm:$0xf]
  %v134 = vld [vmem:[%s3 + $0x4] sm:$0xf]
  %v135 = vld [vmem:[%s3 + $0x8] sm:$0xf]
  %v136 = vld [vmem:[%s3 + $0xc] sm:$0xf]
  %v137 = vld [vmem:[%s4] sm:$0xff]
  %v138 = vld [vmem:[%s4 + $0x8] sm:$0xff]
  %v139 = vld [vmem:[%s4 + $0x10] sm:$0xff]
  %v140 = vld [vmem:[%s4 + $0x18] sm:$0xff]
  %142 = vset.pattern.permute.xlu0 0
  %143 = vperm.xlu0 %142, %v137
  %v144 = vpop.permute.xlu0 %143
  %147 = vset.pattern.permute.xlu0 0
  %148 = vperm.xlu0 %147, %v138
  %v149 = vpop.permute.xlu0 %148
  %152 = vset.pattern.permute.xlu0 0
  %153 = vperm.xlu0 %152, %v139
  %v154 = vpop.permute.xlu0 %153
  %157 = vset.pattern.permute.xlu0 0
  %158 = vperm.xlu0 %157, %v140
  %v159 = vpop.permute.xlu0 %158
  %v165 = vunpack.c.l.b16 %v133
  %v166 = vunpack.c.l.b16 %v134
  %v167 = vunpack.c.l.b16 %v135
  %v168 = vunpack.c.l.b16 %v136
  %v169 = vpack.c.b16 %v166, %v165
  %v170 = vpack.c.b16 %v168, %v167
  %vm171 = vcmask 261120
  %v173 = vsel %vm171, %v169, 0
  %v176 = vsel %vm171, %v170, 0
  %178 = vmatprep.subr.bf16.mxu0 0
  %179 = vmatpush1.bf16.msra.mxu0 %v131
  %180 = vmatprep.subr.bf16.mxu0 0
  %181 = vmatpush1.bf16.msra.mxu0 %v132
  %182 = vmatprep.subr.bf16.mxu0 0
  %183 = vmatpush1.bf16.msra.mxu0 0
  %184 = vmatprep.subr.bf16.mxu0 0
  %185 = vmatpush1.bf16.msra.mxu0 0
  %186 = vmatprep.subr.bf16.mxu0 0
  %187 = vmatpush1.bf16.msra.mxu0 0
  %188 = vmatprep.subr.bf16.mxu0 0
  %189 = vmatpush1.bf16.msra.mxu0 0
  %190 = vmatprep.subr.bf16.mxu0 0
  %191 = vmatpush1.bf16.msra.mxu0 0
  %192 = vmatprep.subr.bf16.mxu0 0
  %193 = vmatpush1.bf16.msra.mxu0 0
  %194 = vmatprep.subr.bf16.mxu0 0
  %195 = vmatpush1.bf16.msra.mxu0 0
  %196 = vmatprep.subr.bf16.mxu0 0
  %197 = vmatpush1.bf16.msra.mxu0 0
  %198 = vmatprep.subr.bf16.mxu0 0
  %199 = vmatpush1.bf16.msra.mxu0 0
  %200 = vmatprep.subr.bf16.mxu0 0
  %201 = vmatpush1.bf16.msra.mxu0 0
  %202 = vmatprep.subr.bf16.mxu0 0
  %203 = vmatpush1.bf16.msra.mxu0 0
  %204 = vmatprep.subr.bf16.mxu0 0
  %205 = vmatpush1.bf16.msra.mxu0 0
  %206 = vmatprep.subr.bf16.mxu0 0
  %207 = vmatpush1.bf16.msra.mxu0 0
  %208 = vmatprep.subr.bf16.mxu0 0
  %209 = vmatpush1.bf16.msra.mxu0 0
  %210 = vmatprep.mubr.bf16.mxu0 0
  %211 = vmatmul.mubr.bf16.gmra.mrb[0].mxu0 %v173
  %v212 = vpop.f32.mrb[0].mxu0
  %v213 = vadd.f32 %v144, %v212
  %v214 = vpop.f32.mrb[0].mxu0
  %v215 = vpop.f32.mrb[0].mxu0
  %v216 = vadd.f32 %v149, %v215
  %v217 = vpop.f32.mrb[0].mxu0
  %218 = vmatprep.mubr.bf16.mxu0 0
  %219 = vmatmul.mubr.bf16.gmra.mrb[0].mxu0 %v176
  %v220 = vpop.f32.mrb[0].mxu0
  %v221 = vadd.f32 %v154, %v220
  %v222 = vpop.f32.mrb[0].mxu0
  %v223 = vpop.f32.mrb[0].mxu0
  %v224 = vadd.f32 %v159, %v223
  %v225 = vpop.f32.mrb[0].mxu0
  %226 = vdwg.mxu0
  %v227 = vmax.f32 %v213, 0.0
  %v228 = vmax.f32 %v216, 0.0
  %v229 = vmax.f32 %v221, 0.0
  %v230 = vmax.f32 %v224, 0.0
  %v231 = vpack.c.bf16 %v228, %v227
  %v232 = vpack.c.bf16 %v230, %v229
  %v233 = vld [vmem:[%s5] sm:$0xf]
  %v234 = vld [vmem:[%s5 + $0x4] sm:$0xf]
  %v235 = vld [vmem:[%s6] sm:$0xff]
  %v236 = vld [vmem:[%s6 + $0x8] sm:$0xff]
  %238 = vset.pattern.permute.xlu0 0
  %239 = vperm.xlu0 %238, %v235
  %v240 = vpop.permute.xlu0 %239
  %243 = vset.pattern.permute.xlu0 0
  %244 = vperm.xlu0 %243, %v236
  %v245 = vpop.permute.xlu0 %244
  %v249 = vunpack.c.l.b16 %v233
  %v250 = vunpack.c.l.b16 %v234
  %v251 = vpack.c.b16 %v250, %v249
  %v253 = vsel %vm171, %v251, 0
  %255 = vmatprep.subr.bf16.mxu0 0
  %256 = vmatpush1.bf16.msra.mxu0 %v231
  %257 = vmatprep.subr.bf16.mxu0 0
  %258 = vmatpush1.bf16.msra.mxu0 %v232
  %259 = vmatprep.subr.bf16.mxu0 0
  %260 = vmatpush1.bf16.msra.mxu0 0
  %261 = vmatprep.subr.bf16.mxu0 0
  %262 = vmatpush1.bf16.msra.mxu0 0
  %263 = vmatprep.subr.bf16.mxu0 0
  %264 = vmatpush1.bf16.msra.mxu0 0
  %265 = vmatprep.subr.bf16.mxu0 0
  %266 = vmatpush1.bf16.msra.mxu0 0
  %267 = vmatprep.subr.bf16.mxu0 0
  %268 = vmatpush1.bf16.msra.mxu0 0
  %269 = vmatprep.subr.bf16.mxu0 0
  %270 = vmatpush1.bf16.msra.mxu0 0
  %271 = vmatprep.subr.bf16.mxu0 0
  %272 = vmatpush1.bf16.msra.mxu0 0
  %273 = vmatprep.subr.bf16.mxu0 0
  %274 = vmatpush1.bf16.msra.mxu0 0
  %275 = vmatprep.subr.bf16.mxu0 0
  %276 = vmatpush1.bf16.msra.mxu0 0
  %277 = vmatprep.subr.bf16.mxu0 0
  %278 = vmatpush1.bf16.msra.mxu0 0
  %279 = vmatprep.subr.bf16.mxu0 0
  %280 = vmatpush1.bf16.msra.mxu0 0
  %281 = vmatprep.subr.bf16.mxu0 0
  %282 = vmatpush1.bf16.msra.mxu0 0
  %283 = vmatprep.subr.bf16.mxu0 0
  %284 = vmatpush1.bf16.msra.mxu0 0
  %285 = vmatprep.subr.bf16.mxu0 0
  %286 = vmatpush1.bf16.msra.mxu0 0
  %287 = vmatprep.mubr.bf16.mxu0 0
  %288 = vmatmul.mubr.bf16.gmra.mrb[0].mxu0 %v253
  %v289 = vpop.f32.mrb[0].mxu0
  %v290 = vadd.f32 %v240, %v289
  %v291 = vpop.f32.mrb[0].mxu0
  %v292 = vpop.f32.mrb[0].mxu0
  %v293 = vadd.f32 %v245, %v292
  %v294 = vpop.f32.mrb[0].mxu0
  %295 = vdwg.mxu0
  %296 = vst [vmem:[%s7] sm:$0xff] %v290
  %297 = vst [vmem:[%s7 + $0x8] sm:$0xff] %v293
  // Predicated region
  $region30: #{q_mat_forward.1} parent=0 // pred_check
    _
  $region31: #{q_mat_forward.1} parent=0 // pred_check_branch
    %299 = sbr.rel (0) target = $region33
  $region32: #{q_mat_forward.1} parent=0 // pred_region
    _
  $region33: #{q_mat_forward.1} parent=0 // pred_fallthru
    _
  // Predicated region
  $region34: #{q_mat_forward.1} parent=0 // pred_check
    _
  $region35: #{q_mat_forward.1} parent=0 // pred_check_branch
    %301 = sbr.rel (0) target = $region37
  $region36: #{q_mat_forward.1} parent=0 // pred_region
    _
  $region37: #{q_mat_forward.1} parent=0 // pred_fallthru
    _

</llo_original>
